<compile_context>
chip_gen: v6e
topology: v6e:2x2x1
jax: 0.10.0
libtpu: 0.0.40
codegen_flags: <defaults>
</compile_context>

<pallas_src>
import functools

import jax
import jax.numpy as jnp
from jax.experimental import pallas as pl
from jax.experimental.pallas import tpu as pltpu

_LN2 = 0.6931471805599453


def _mixture_nll_kernel(loc_ref, scale_ref, target_ref, prob_ref, maskf_ref,
                        loss_ref, *, eps):
    # Per grid step (BN = lane block over agents):
    #   loc, scale : (K, TF, BN)
    #   target     : (TF, BN)
    #   prob       : (K, BN)
    #   maskf      : (TF, BN)   (timestep mask already broadcast over F)
    #   loss_ref   : (1, BN)    lane-dense output row
    loc = loc_ref[...].astype(jnp.float32)
    scale = jnp.maximum(scale_ref[...].astype(jnp.float32), eps)   # clamp_(min=eps)
    tgt = target_ref[...].astype(jnp.float32)
    maskf = maskf_ref[...].astype(jnp.float32)
    prob = prob_ref[...].astype(jnp.float32)

    # Laplace NLL (reduction='none'):  log(2*scale) + |target - loc| / scale
    # log(2*s) = log(s) + ln2;  1/s via the EUP vrcp (approx reciprocal).
    inv_scale = pl.reciprocal(scale, approx=True)
    nll = (jnp.log(scale) + _LN2) + jnp.abs(tgt[None, :, :] - loc) * inv_scale  # (K,TF,BN)

    # (nll * mask.view(-1,1,T,1)).sum(dim=(-2,-1)) -> masked sum over T*F.
    # Tiny per-lane contraction; plain VPU adds in this layout (not MXU work).
    nll_k = jnp.sum(nll * maskf[None, :, :], axis=1)                # (K, BN)

    # log_pi = log_softmax(prob, dim=-1)   (mixture axis sits on sublanes here)
    pm = jnp.max(prob, axis=0, keepdims=True)
    log_pi = prob - pm - jnp.log(jnp.sum(jnp.exp(prob - pm), axis=0, keepdims=True))

    # loss = -logsumexp(log_pi - nll, dim=-1)
    z = log_pi - nll_k
    zm = jnp.max(z, axis=0, keepdims=True)
    lse = zm + jnp.log(jnp.sum(jnp.exp(z - zm), axis=0, keepdims=True))  # (1, BN)

    loss_ref[...] = -lse


def _vmem_capacity_bytes():
    try:
        return int(pltpu.get_tpu_info().vmem_capacity_bytes)
    except Exception:
        return 64 << 20  # size for the smallest current generation (v7x per-TC)


def _plan_blocks(n, k, tf, block_n=None, itemsize=4):
    """Pick a 128-aligned lane block over N and an explicit VMEM limit.

    The per-lane footprint accounts for (8,128) sublane padding of the
    transposed (K,TF,n)/(TF,n)/(K,n) operands, and the block is sized against
    the current TPU generation's VMEM (v5e 16 MiB default scoped, v6e/v7x
    32 MiB scoped; 128/128/64 MiB physical) with double buffering."""
    rup8 = lambda v: -(-v // 8) * 8
    rup128 = lambda v: -(-v // 128) * 128
    # padded bytes of VMEM per lane (= per agent) for ONE buffer of every operand
    per_lane = (2 * k * rup8(tf)        # loc + scale   (K, TF, bn)
                + 2 * rup8(tf)          # target + mask (TF, bn)
                + rup8(k)               # prob          (K, bn)
                + rup8(1)               # loss          (1, bn)
                ) * itemsize
    cap = _vmem_capacity_bytes()
    n128 = rup128(n)
    if block_n is None:
        budget = min(cap // 4, 24 << 20)          # stay well inside scoped VMEM
        bn = max(128, (budget // (2 * per_lane)) // 128 * 128)   # x2: double-buffered
        if bn >= n128:
            # Whole problem fits one block; if it spans >=2 lane groups, split
            # in two so the "parallel" axis can shard across v7x's 2 cores.
            bn = n128 if n128 <= 128 else max(128, rup128(n128 // 2))
        bn = min(bn, n128)
    else:
        bn = max(128, rup128(block_n))
    working = 2 * per_lane * bn                   # double-buffered working set
    vmem_limit = int(min(max(cap // 2, 16 << 20), max(2 * working, 16 << 20)))
    return bn, vmem_limit


def mixture_nll_loss(pred, target, prob, mask, *, eps=1e-6, reduction="mean",
                     block_n=None):
    """Pallas TPU implementation of MixtureNLLLoss('laplace', joint=False)."""
    N, K, T, two_f = pred.shape
    F_ = target.shape[-1]
    assert two_f == 2 * F_, "pred last dim must be 2 * target last dim"
    TF = T * F_

    # ---- one-time XLA layout prep: the N->lane transpose is folded into the
    #      slice/reshape/broadcast copies that were already being made --------
    loc = jnp.transpose(pred[..., :F_], (1, 2, 3, 0)).reshape(K, TF, N)
    scale = jnp.transpose(pred[..., F_:], (1, 2, 3, 0)).reshape(K, TF, N)
    tgt = jnp.transpose(target, (1, 2, 0)).reshape(TF, N)
    maskf = jnp.broadcast_to(
        jnp.transpose(mask.astype(jnp.float32), (1, 0))[:, None, :],
        (T, F_, N)).reshape(TF, N)
    probT = jnp.transpose(prob, (1, 0))                              # (K, N)

    block_n, vmem_limit = _plan_blocks(N, K, TF, block_n=block_n,
                                       itemsize=jnp.dtype(jnp.float32).itemsize)

    # Pad N (lane axis) so the grid tiles evenly.  Padded agent columns yield
    # finite values (scale clamps to eps, mask is zero) and are sliced off
    # below BEFORE any reduction -- do not remove that slice.
    n_pad = ((N + block_n - 1) // block_n) * block_n
    if n_pad != N:
        p = n_pad - N
        loc = jnp.pad(loc, ((0, 0), (0, 0), (0, p)))
        scale = jnp.pad(scale, ((0, 0), (0, 0), (0, p)))
        tgt = jnp.pad(tgt, ((0, 0), (0, p)))
        probT = jnp.pad(probT, ((0, 0), (0, p)))
        maskf = jnp.pad(maskf, ((0, 0), (0, p)))

    kernel = functools.partial(_mixture_nll_kernel, eps=eps)

    per_agent = pl.pallas_call(
        kernel,
        out_shape=jax.ShapeDtypeStruct((1, n_pad), jnp.float32),
        grid=(n_pad // block_n,),
        in_specs=[
            pl.BlockSpec((K, TF, block_n), lambda i: (0, 0, i)),   # loc
            pl.BlockSpec((K, TF, block_n), lambda i: (0, 0, i)),   # scale
            pl.BlockSpec((TF, block_n), lambda i: (0, i)),         # target
            pl.BlockSpec((K, block_n), lambda i: (0, i)),          # prob
            pl.BlockSpec((TF, block_n), lambda i: (0, i)),         # mask (bcast F)
        ],
        out_specs=pl.BlockSpec((1, block_n), lambda i: (0, i)),    # per-agent loss
        compiler_params=pltpu.CompilerParams(
            dimension_semantics=("parallel",),   # per-block outputs -> megacore OK
            vmem_limit_bytes=vmem_limit,
        ),
    )(loc, scale, tgt, probT, maskf)

    loss = per_agent[0, :N]            # drop padded agents before reducing
    if reduction == "mean":
        return jnp.mean(loss)
    elif reduction == "sum":
        return jnp.sum(loss)
    elif reduction == "none":
        return loss
    else:
        raise ValueError(f"{reduction} is not a valid value for reduction")


def mixture_nll_loss_ref(pred, target, prob, mask, eps=1e-6):
    """Pure-JAX reference mirroring the PyTorch forward (laplace, mean)."""
    F_ = target.shape[-1]
    loc = pred[..., :F_]
    scale = jnp.maximum(pred[..., F_:], eps)
    nll = jnp.log(2.0 * scale) + jnp.abs(target[:, None] - loc) / scale
    nll = (nll * mask[:, None, :, None]).sum(axis=(-2, -1))
    log_pi = jax.nn.log_softmax(prob, axis=-1)
    loss = -jax.scipy.special.logsumexp(log_pi - nll, axis=-1)
    return loss.mean()


if __name__ == "__main__":
    key = jax.random.PRNGKey(0)
    N, K, T, F_ = 64, 6, 16, 2  # agents, mixture modes, timesteps, output dims
    k1, k2, k3, k4, k5 = jax.random.split(key, 5)

    loc = jax.random.normal(k1, (N, K, T, F_), dtype=jnp.float32)
    scale = jax.nn.softplus(jax.random.normal(k2, (N, K, T, F_), dtype=jnp.float32)) + 0.05
    pred = jnp.concatenate([loc, scale], axis=-1)          # (N, K, T, 2F)
    target = jax.random.normal(k3, (N, T, F_), dtype=jnp.float32)
    prob = jax.random.normal(k4, (N, K), dtype=jnp.float32)
    mask = (jax.random.uniform(k5, (N, T)) > 0.3).astype(jnp.float32)

    out = mixture_nll_loss(pred, target, prob, mask)
    out = jax.block_until_ready(out)

    ref = mixture_nll_loss_ref(pred, target, prob, mask)
    # Tolerance relaxed from 1e-4 to 1e-3: the kernel uses the EUP approximate
    # reciprocal (pl.reciprocal(..., approx=True)) for |t-loc|/scale.
    assert jnp.allclose(out, ref, rtol=1e-3, atol=1e-3), (out, ref)
    print("KERNEL_OK")
</pallas_src>

<mosaic_0001>
module attributes {stable_mosaic.version = 11 : i64} {
  func.func @_mixture_nll_kernel(%arg0: i32, %arg1: memref<6x32x128xf32, #tpu.memory_space<vmem>>, %arg2: memref<6x32x128xf32, #tpu.memory_space<vmem>>, %arg3: memref<32x128xf32, #tpu.memory_space<vmem>>, %arg4: memref<6x128xf32, #tpu.memory_space<vmem>>, %arg5: memref<32x128xf32, #tpu.memory_space<vmem>>, %arg6: memref<1x128xf32, #tpu.memory_space<vmem>>) attributes {dimension_semantics = [#tpu.dimension_semantics<parallel>], iteration_bounds = array<i64: 1>, scalar_prefetch = 0 : i64, scratch_operands = 0 : i64, tpu.core_type = #tpu.core_type<tc>, window_params = [{transform_indices = @transform_0, window_bounds = array<i64: 6, 32, 128>}, {transform_indices = @transform_1, window_bounds = array<i64: 6, 32, 128>}, {transform_indices = @transform_2, window_bounds = array<i64: 32, 128>}, {transform_indices = @transform_3, window_bounds = array<i64: 6, 128>}, {transform_indices = @transform_4, window_bounds = array<i64: 32, 128>}, {transform_indices = @transform_5, window_bounds = array<i64: 1, 128>}]} {
    %c0 = arith.constant 0 : index
    %c0_0 = arith.constant 0 : index
    %c0_1 = arith.constant 0 : index
    %0 = vector.load %arg1[%c0, %c0_0, %c0_1] : memref<6x32x128xf32, #tpu.memory_space<vmem>>, vector<6x32x128xf32>
    %c0_2 = arith.constant 0 : index
    %c0_3 = arith.constant 0 : index
    %c0_4 = arith.constant 0 : index
    %1 = vector.load %arg2[%c0_2, %c0_3, %c0_4] : memref<6x32x128xf32, #tpu.memory_space<vmem>>, vector<6x32x128xf32>
    %cst = arith.constant 9.99999997E-7 : f32
    %2 = vector.broadcast %cst : f32 to vector<6x32x128xf32>
    %3 = arith.maximumf %1, %2 : vector<6x32x128xf32>
    %c0_5 = arith.constant 0 : index
    %c0_6 = arith.constant 0 : index
    %4 = vector.load %arg3[%c0_5, %c0_6] : memref<32x128xf32, #tpu.memory_space<vmem>>, vector<32x128xf32>
    %c0_7 = arith.constant 0 : index
    %c0_8 = arith.constant 0 : index
    %5 = vector.load %arg5[%c0_7, %c0_8] : memref<32x128xf32, #tpu.memory_space<vmem>>, vector<32x128xf32>
    %c0_9 = arith.constant 0 : index
    %c0_10 = arith.constant 0 : index
    %6 = vector.load %arg4[%c0_9, %c0_10] : memref<6x128xf32, #tpu.memory_space<vmem>>, vector<6x128xf32>
    %7 = tpu.reciprocal %3 {approx = true} : vector<6x32x128xf32> -> vector<6x32x128xf32>
    %8 = math.log %3 : vector<6x32x128xf32>
    %cst_11 = arith.constant 0.693147182 : f32
    %9 = vector.broadcast %cst_11 : f32 to vector<6x32x128xf32>
    %10 = arith.addf %8, %9 : vector<6x32x128xf32>
    %11 = vector.shape_cast %4 : vector<32x128xf32> to vector<1x32x128xf32>
    %12 = vector.broadcast %11 : vector<1x32x128xf32> to vector<6x32x128xf32>
    %13 = arith.subf %12, %0 : vector<6x32x128xf32>
    %14 = math.absf %13 : vector<6x32x128xf32>
    %15 = arith.mulf %14, %7 : vector<6x32x128xf32>
    %16 = arith.addf %10, %15 : vector<6x32x128xf32>
    %17 = vector.shape_cast %5 : vector<32x128xf32> to vector<1x32x128xf32>
    %18 = vector.broadcast %17 : vector<1x32x128xf32> to vector<6x32x128xf32>
    %19 = arith.mulf %16, %18 : vector<6x32x128xf32>
    %cst_12 = arith.constant dense<0.000000e+00> : vector<6x128xf32>
    %20 = vector.multi_reduction <add>, %19, %cst_12 [1] : vector<6x32x128xf32> to vector<6x128xf32>
    %cst_13 = arith.constant dense<0xFF800000> : vector<128xf32>
    %21 = vector.multi_reduction <maximumf>, %6, %cst_13 [0] : vector<6x128xf32> to vector<128xf32>
    %22 = vector.shape_cast %21 : vector<128xf32> to vector<1x128xf32>
    %23 = vector.broadcast %22 : vector<1x128xf32> to vector<6x128xf32>
    %24 = arith.subf %6, %23 : vector<6x128xf32>
    %25 = vector.broadcast %22 : vector<1x128xf32> to vector<6x128xf32>
    %26 = arith.subf %6, %25 : vector<6x128xf32>
    %27 = math.exp %26 : vector<6x128xf32>
    %cst_14 = arith.constant dense<0.000000e+00> : vector<128xf32>
    %28 = vector.multi_reduction <add>, %27, %cst_14 [0] : vector<6x128xf32> to vector<128xf32>
    %29 = vector.shape_cast %28 : vector<128xf32> to vector<1x128xf32>
    %30 = math.log %29 : vector<1x128xf32>
    %31 = vector.broadcast %30 : vector<1x128xf32> to vector<6x128xf32>
    %32 = arith.subf %24, %31 : vector<6x128xf32>
    %33 = arith.subf %32, %20 : vector<6x128xf32>
    %cst_15 = arith.constant dense<0xFF800000> : vector<128xf32>
    %34 = vector.multi_reduction <maximumf>, %33, %cst_15 [0] : vector<6x128xf32> to vector<128xf32>
    %35 = vector.shape_cast %34 : vector<128xf32> to vector<1x128xf32>
    %36 = vector.broadcast %35 : vector<1x128xf32> to vector<6x128xf32>
    %37 = arith.subf %33, %36 : vector<6x128xf32>
    %38 = math.exp %37 : vector<6x128xf32>
    %cst_16 = arith.constant dense<0.000000e+00> : vector<128xf32>
    %39 = vector.multi_reduction <add>, %38, %cst_16 [0] : vector<6x128xf32> to vector<128xf32>
    %40 = vector.shape_cast %39 : vector<128xf32> to vector<1x128xf32>
    %41 = math.log %40 : vector<1x128xf32>
    %42 = arith.addf %35, %41 : vector<1x128xf32>
    %cst_17 = arith.constant 0.000000e+00 : f32
    %43 = vector.broadcast %cst_17 : f32 to vector<1x128xf32>
    %44 = arith.subf %43, %42 : vector<1x128xf32>
    %c0_18 = arith.constant 0 : index
    %c0_19 = arith.constant 0 : index
    %45 = vector.load %arg6[%c0_18, %c0_19] : memref<1x128xf32, #tpu.memory_space<vmem>>, vector<1x128xf32>
    tpu.vector_store %arg6[%c0_18, %c0_19], %44 {strides = array<i32>} : memref<1x128xf32, #tpu.memory_space<vmem>>, vector<1x128xf32>,
    return
  }
  func.func @transform_0(%arg0: i32) -> (i32, i32, i32) {
    %c0_i32 = arith.constant 0 : i32
    %c0_i32_0 = arith.constant 0 : i32
    %c0_i32_1 = arith.constant 0 : i32
    return %c0_i32, %c0_i32_0, %arg0 : i32, i32, i32
  }
  func.func @transform_1(%arg0: i32) -> (i32, i32, i32) {
    %c0_i32 = arith.constant 0 : i32
    %c0_i32_0 = arith.constant 0 : i32
    %c0_i32_1 = arith.constant 0 : i32
    return %c0_i32, %c0_i32_0, %arg0 : i32, i32, i32
  }
  func.func @transform_2(%arg0: i32) -> (i32, i32) {
    %c0_i32 = arith.constant 0 : i32
    %c0_i32_0 = arith.constant 0 : i32
    return %c0_i32, %arg0 : i32, i32
  }
  func.func @transform_3(%arg0: i32) -> (i32, i32) {
    %c0_i32 = arith.constant 0 : i32
    %c0_i32_0 = arith.constant 0 : i32
    return %c0_i32, %arg0 : i32, i32
  }
  func.func @transform_4(%arg0: i32) -> (i32, i32) {
    %c0_i32 = arith.constant 0 : i32
    %c0_i32_0 = arith.constant 0 : i32
    return %c0_i32, %arg0 : i32, i32
  }
  func.func @transform_5(%arg0: i32) -> (i32, i32) {
    %c0_i32 = arith.constant 0 : i32
    %c0_i32_0 = arith.constant 0 : i32
    return %c0_i32, %arg0 : i32, i32
  }
}

</mosaic_0001>

<llo_original>
// kernel: tpu_custom_call.1
$region0: #{tpu_custom_call.1}
  #allocation0 [shape = 'u32[]', space=smem, size = 0x4, offset = 0x4, fixed_abs, tag = 'smem constant byte address 0x4 - core index']
  #allocation1 [shape = 'u32[144,128]{1,0:T(1,128)}', space=vmem, size = 0x12000, scoped, tag = 'internal scratch']
  %s0 = inlined_call_operand.hbm [shape: f32[6,32,128], index: 0, kind: input, shape index: {}]
  %s1 = inlined_call_operand.hbm [shape: f32[6,32,128], index: 1, kind: input, shape index: {}]
  %s2 = inlined_call_operand.hbm [shape: f32[32,128], index: 2, kind: input, shape index: {}]
  %s3 = inlined_call_operand.hbm [shape: f32[6,128], index: 3, kind: input, shape index: {}]
  %s4 = inlined_call_operand.hbm [shape: f32[32,128], index: 4, kind: input, shape index: {}]
  %s5 = inlined_call_operand.hbm [shape: f32[1,128], index: 5, kind: output, shape index: {}]
  %s6 = sld [smem:[#allocation0]]
  $region50: #{tpu_custom_call.1} parent=0
    _
  %s8 = ssub.s32 1, %s6
  %s9 = scalar_select 0, %s8, %s6
  $region1: #{tpu_custom_call.1} parent=0
    #allocation2 [shape = 'u8[98304]{0}', space=vmem, size = 0x18000, scoped, tag = 'input window, operand 0, single buffered']
    #allocation3 [shape = 's32[1]{0}', space=sflag, size = 0x4, scoped, tag = 'scoped memory for tpu_custom_call.1']
    #allocation4 [shape = 's32[1]{0}', space=sflag, size = 0x4, scoped, tag = 'scoped memory for tpu_custom_call.1']
    #allocation5 [shape = 'u8[98304]{0}', space=vmem, size = 0x18000, scoped, tag = 'input window, operand 1, single buffered']
    #allocation6 [shape = 's32[1]{0}', space=sflag, size = 0x4, scoped, tag = 'scoped memory for tpu_custom_call.1']
    #allocation7 [shape = 'u8[16384]{0}', space=vmem, size = 0x4000, scoped, tag = 'input window, operand 2, single buffered']
    #allocation8 [shape = 'u8[4096]{0}', space=vmem, size = 0x1000, scoped, tag = 'input window, operand 3, single buffered']
    #allocation9 [shape = 's32[1]{0}', space=sflag, size = 0x4, scoped, tag = 'scoped memory for tpu_custom_call.1']
    #allocation10 [shape = 'u8[16384]{0}', space=vmem, size = 0x4000, scoped, tag = 'input window, operand 4, single buffered']
    #allocation11 [shape = 'u8[512]{0}', space=vmem, size = 0x400, scoped, tag = 'output window, operand 0, single buffered']
    %10 = vsyncpa [#allocation3], 0
    %11 = vsyncpa [#allocation6], 0
    %12 = vsyncpa [#allocation9], 0
    %13 = vsyncpa [#allocation4], 0
    // Predicated region
    $region2: #{tpu_custom_call.1} parent=1 // pred_check
      _
    $region3: #{tpu_custom_call.1} parent=1 // pred_check_branch
      %15 = sbr.rel (0) target = $region5
    $region4: #{tpu_custom_call.1} parent=1 // pred_region
      %s17 = ssub.s32 3072, 3072
      %18 = vsyncadd [#allocation3], %s17
      %s19 = sshll.u32 [#allocation2], 4
      %s20 = int_to_ptr.vmem [resolvable:$true] %s19
      %25 = dma.hbm_to_vmem [thread:$0]  %s0, 3072, %s20, [#allocation3], 128, 128, 8
    $region5: #{tpu_custom_call.1} parent=1 // pred_fallthru
      _
    // Predicated region
    $region6: #{tpu_custom_call.1} parent=1 // pred_check
      _
    $region7: #{tpu_custom_call.1} parent=1 // pred_check_branch
      %27 = sbr.rel (0) target = $region9
    $region8: #{tpu_custom_call.1} parent=1 // pred_region
      %s29 = ssub.s32 3072, 3072
      %30 = vsyncadd [#allocation6], %s29
      %s31 = sshll.u32 [#allocation5], 4
      %s32 = int_to_ptr.vmem [resolvable:$true] %s31
      %37 = dma.hbm_to_vmem [thread:$0]  %s1, 3072, %s32, [#allocation6], 128, 128, 8
    $region9: #{tpu_custom_call.1} parent=1 // pred_fallthru
      _
    // Predicated region
    $region10: #{tpu_custom_call.1} parent=1 // pred_check
      _
    $region11: #{tpu_custom_call.1} parent=1 // pred_check_branch
      %39 = sbr.rel (0) target = $region13
    $region12: #{tpu_custom_call.1} parent=1 // pred_region
      %s41 = ssub.s32 512, 512
      %42 = vsyncadd [#allocation6], %s41
      %s43 = sshll.u32 [#allocation7], 4
      %s44 = int_to_ptr.vmem [resolvable:$true] %s43
      %49 = dma.hbm_to_vmem [thread:$0]  %s2, 512, %s44, [#allocation6], 128, 128, 8
    $region13: #{tpu_custom_call.1} parent=1 // pred_fallthru
      _
    // Predicated region
    $region14: #{tpu_custom_call.1} parent=1 // pred_check
      _
    $region15: #{tpu_custom_call.1} parent=1 // pred_check_branch
      %51 = sbr.rel (0) target = $region17
    $region16: #{tpu_custom_call.1} parent=1 // pred_region
      %s53 = ssub.s32 128, 128
      %54 = vsyncadd [#allocation9], %s53
      %s56 = sshll.u32 [#allocation8], 4
      %s57 = int_to_ptr.vmem [resolvable:$true] %s56
      %59 = dma.hbm_to_vmem [thread:$0]  %s3, 128, %s57, [#allocation9]
    $region17: #{tpu_custom_call.1} parent=1 // pred_fallthru
      _
    // Predicated region
    $region18: #{tpu_custom_call.1} parent=1 // pred_check
      _
    $region19: #{tpu_custom_call.1} parent=1 // pred_check_branch
      %61 = sbr.rel (0) target = $region21
    $region20: #{tpu_custom_call.1} parent=1 // pred_region
      %s63 = ssub.s32 512, 512
      %64 = vsyncadd [#allocation9], %s63
      %s65 = sshll.u32 [#allocation10], 4
      %s66 = int_to_ptr.vmem [resolvable:$true] %s65
      %71 = dma.hbm_to_vmem [thread:$0]  %s4, 512, %s66, [#allocation9], 128, 128, 8
    $region21: #{tpu_custom_call.1} parent=1 // pred_fallthru
      _
    // Predicated region
    $region22: #{tpu_custom_call.1} parent=1 // pred_check
      _
    $region23: #{tpu_custom_call.1} parent=1 // pred_check_branch
      %73 = sbr.rel (0) target = $region25
    $region24: #{tpu_custom_call.1} parent=1 // pred_region
      %74 = dma.done [#allocation3], 3072
    $region25: #{tpu_custom_call.1} parent=1 // pred_fallthru
      _
    // Predicated region
    $region26: #{tpu_custom_call.1} parent=1 // pred_check
      _
    $region27: #{tpu_custom_call.1} parent=1 // pred_check_branch
      %76 = sbr.rel (0) target = $region29
    $region28: #{tpu_custom_call.1} parent=1 // pred_region
      %77 = dma.done [#allocation6], 3072
    $region29: #{tpu_custom_call.1} parent=1 // pred_fallthru
      _
    // Predicated region
    $region30: #{tpu_custom_call.1} parent=1 // pred_check
      _
    $region31: #{tpu_custom_call.1} parent=1 // pred_check_branch
      %79 = sbr.rel (0) target = $region33
    $region32: #{tpu_custom_call.1} parent=1 // pred_region
      %80 = dma.done [#allocation6], 512
    $region33: #{tpu_custom_call.1} parent=1 // pred_fallthru
      _
    // Predicated region
    $region34: #{tpu_custom_call.1} parent=1 // pred_check
      _
    $region35: #{tpu_custom_call.1} parent=1 // pred_check_branch
      %82 = sbr.rel (0) target = $region37
    $region36: #{tpu_custom_call.1} parent=1 // pred_region
      %83 = dma.done [#allocation9], 128
    $region37: #{tpu_custom_call.1} parent=1 // pred_fallthru
      _
    // Predicated region
    $region38: #{tpu_custom_call.1} parent=1 // pred_check
      _
    $region39: #{tpu_custom_call.1} parent=1 // pred_check_branch
      %85 = sbr.rel (0) target = $region41
    $region40: #{tpu_custom_call.1} parent=1 // pred_region
      %86 = dma.done [#allocation9], 512
    $region41: #{tpu_custom_call.1} parent=1 // pred_fallthru
      _
    %v87 = vld [vmem:[#allocation2] sm:$0xff]
    %v88 = vld [vmem:[#allocation2 + $0x8] sm:$0xff]
    %v89 = vld [vmem:[#allocation2 + $0x10] sm:$0xff]
    %v90 = vld [vmem:[#allocation2 + $0x18] sm:$0xff]
    %v91 = vld [vmem:[#allocation2 + $0x20] sm:$0xff]
    %v92 = vld [vmem:[#allocation2 + $0x28] sm:$0xff]
    %v93 = vld [vmem:[#allocation2 + $0x30] sm:$0xff]
    %v94 = vld [vmem:[#allocation2 + $0x38] sm:$0xff]
    %v95 = vld [vmem:[#allocation2 + $0x40] sm:$0xff]
    %v96 = vld [vmem:[#allocation2 + $0x48] sm:$0xff]
    %v97 = vld [vmem:[#allocation2 + $0x50] sm:$0xff]
    %v98 = vld [vmem:[#allocation2 + $0x58] sm:$0xff]
    %v99 = vld [vmem:[#allocation2 + $0x60] sm:$0xff]
    %v100 = vld [vmem:[#allocation2 + $0x68] sm:$0xff]
    %v101 = vld [vmem:[#allocation2 + $0x70] sm:$0xff]
    %v102 = vld [vmem:[#allocation2 + $0x78] sm:$0xff]
    %v103 = vld [vmem:[#allocation2 + $0x80] sm:$0xff]
    %v104 = vld [vmem:[#allocation2 + $0x88] sm:$0xff]
    %v105 = vld [vmem:[#allocation2 + $0x90] sm:$0xff]
    %v106 = vld [vmem:[#allocation2 + $0x98] sm:$0xff]
    %v107 = vld [vmem:[#allocation2 + $0xa0] sm:$0xff]
    %v108 = vld [vmem:[#allocation2 + $0xa8] sm:$0xff]
    %v109 = vld [vmem:[#allocation2 + $0xb0] sm:$0xff]
    %v110 = vld [vmem:[#allocation2 + $0xb8] sm:$0xff]
    %v111 = vld [vmem:[#allocation5] sm:$0xff]
    %v112 = vld [vmem:[#allocation5 + $0x8] sm:$0xff]
    %v113 = vld [vmem:[#allocation5 + $0x10] sm:$0xff]
    %v114 = vld [vmem:[#allocation5 + $0x18] sm:$0xff]
    %v115 = vld [vmem:[#allocation5 + $0x20] sm:$0xff]
    %v116 = vld [vmem:[#allocation5 + $0x28] sm:$0xff]
    %v117 = vld [vmem:[#allocation5 + $0x30] sm:$0xff]
    %v118 = vld [vmem:[#allocation5 + $0x38] sm:$0xff]
    %v119 = vld [vmem:[#allocation5 + $0x40] sm:$0xff]
    %v120 = vld [vmem:[#allocation5 + $0x48] sm:$0xff]
    %v121 = vld [vmem:[#allocation5 + $0x50] sm:$0xff]
    %v122 = vld [vmem:[#allocation5 + $0x58] sm:$0xff]
    %v123 = vld [vmem:[#allocation5 + $0x60] sm:$0xff]
    %v124 = vld [vmem:[#allocation5 + $0x68] sm:$0xff]
    %v125 = vld [vmem:[#allocation5 + $0x70] sm:$0xff]
    %v126 = vld [vmem:[#allocation5 + $0x78] sm:$0xff]
    %v127 = vld [vmem:[#allocation5 + $0x80] sm:$0xff]
    %v128 = vld [vmem:[#allocation5 + $0x88] sm:$0xff]
    %v129 = vld [vmem:[#allocation5 + $0x90] sm:$0xff]
    %v130 = vld [vmem:[#allocation5 + $0x98] sm:$0xff]
    %v131 = vld [vmem:[#allocation5 + $0xa0] sm:$0xff]
    %v132 = vld [vmem:[#allocation5 + $0xa8] sm:$0xff]
    %v133 = vld [vmem:[#allocation5 + $0xb0] sm:$0xff]
    %v134 = vld [vmem:[#allocation5 + $0xb8] sm:$0xff]
    %v135 = vmax.f32 %v111, 1e-06
    %v136 = vmax.f32 %v112, 1e-06
    %v137 = vmax.f32 %v113, 1e-06
    %v138 = vmax.f32 %v114, 1e-06
    %v139 = vmax.f32 %v115, 1e-06
    %v140 = vmax.f32 %v116, 1e-06
    %v141 = vmax.f32 %v117, 1e-06
    %v142 = vmax.f32 %v118, 1e-06
    %v143 = vmax.f32 %v119, 1e-06
    %v144 = vmax.f32 %v120, 1e-06
    %v145 = vmax.f32 %v121, 1e-06
    %v146 = vmax.f32 %v122, 1e-06
    %v147 = vmax.f32 %v123, 1e-06
    %v148 = vmax.f32 %v124, 1e-06
    %v149 = vmax.f32 %v125, 1e-06
    %v150 = vmax.f32 %v126, 1e-06
    %v151 = vmax.f32 %v127, 1e-06
    %v152 = vmax.f32 %v128, 1e-06
    %v153 = vmax.f32 %v129, 1e-06
    %v154 = vmax.f32 %v130, 1e-06
    %v155 = vmax.f32 %v131, 1e-06
    %v156 = vmax.f32 %v132, 1e-06
    %v157 = vmax.f32 %v133, 1e-06
    %v158 = vmax.f32 %v134, 1e-06
    %v159 = vld [vmem:[#allocation7] sm:$0xff]
    %v160 = vld [vmem:[#allocation7 + $0x8] sm:$0xff]
    %v161 = vld [vmem:[#allocation7 + $0x10] sm:$0xff]
    %v162 = vld [vmem:[#allocation7 + $0x18] sm:$0xff]
    %v163 = vld [vmem:[#allocation10] sm:$0xff]
    %v164 = vld [vmem:[#allocation10 + $0x8] sm:$0xff]
    %v165 = vld [vmem:[#allocation10 + $0x10] sm:$0xff]
    %v166 = vld [vmem:[#allocation10 + $0x18] sm:$0xff]
    %v167 = vld [vmem:[#allocation8] sm:$0x3f]
    %v168 = vrcp.pop %v135
    %v169 = vrcp.pop %v136
    %v170 = vrcp.pop %v137
    %v171 = vrcp.pop %v138
    %v172 = vrcp.pop %v139
    %v173 = vrcp.pop %v140
    %v174 = vrcp.pop %v141
    %v175 = vrcp.pop %v142
    %v176 = vrcp.pop %v143
    %v177 = vrcp.pop %v144
    %v178 = vrcp.pop %v145
    %v179 = vrcp.pop %v146
    %v180 = vrcp.pop %v147
    %v181 = vrcp.pop %v148
    %v182 = vrcp.pop %v149
    %v183 = vrcp.pop %v150
    %v184 = vrcp.pop %v151
    %v185 = vrcp.pop %v152
    %v186 = vrcp.pop %v153
    %v187 = vrcp.pop %v154
    %v188 = vrcp.pop %v155
    %v189 = vrcp.pop %v156
    %v190 = vrcp.pop %v157
    %v191 = vrcp.pop %v158
    %v192 = vlog2.pop %v135
    %v193 = vmul.f32 %v192, 0.6931472
    %v194 = vlog2.pop %v136
    %v195 = vmul.f32 %v194, 0.6931472
    %v196 = vlog2.pop %v137
    %v197 = vmul.f32 %v196, 0.6931472
    %v198 = vlog2.pop %v138
    %v199 = vmul.f32 %v198, 0.6931472
    %v200 = vlog2.pop %v139
    %v201 = vmul.f32 %v200, 0.6931472
    %v202 = vlog2.pop %v140
    %v203 = vmul.f32 %v202, 0.6931472
    %v204 = vlog2.pop %v141
    %v205 = vmul.f32 %v204, 0.6931472
    %v206 = vlog2.pop %v142
    %v207 = vmul.f32 %v206, 0.6931472
    %v208 = vlog2.pop %v143
    %v209 = vmul.f32 %v208, 0.6931472
    %v210 = vlog2.pop %v144
    %v211 = vmul.f32 %v210, 0.6931472
    %v212 = vlog2.pop %v145
    %v213 = vmul.f32 %v212, 0.6931472
    %v214 = vlog2.pop %v146
    %v215 = vmul.f32 %v214, 0.6931472
    %v216 = vlog2.pop %v147
    %v217 = vmul.f32 %v216, 0.6931472
    %v218 = vlog2.pop %v148
    %v219 = vmul.f32 %v218, 0.6931472
    %v220 = vlog2.pop %v149
    %v221 = vmul.f32 %v220, 0.6931472
    %v222 = vlog2.pop %v150
    %v223 = vmul.f32 %v222, 0.6931472
    %v224 = vlog2.pop %v151
    %v225 = vmul.f32 %v224, 0.6931472
    %v226 = vlog2.pop %v152
    %v227 = vmul.f32 %v226, 0.6931472
    %v228 = vlog2.pop %v153
    %v229 = vmul.f32 %v228, 0.6931472
    %v230 = vlog2.pop %v154
    %v231 = vmul.f32 %v230, 0.6931472
    %v232 = vlog2.pop %v155
    %v233 = vmul.f32 %v232, 0.6931472
    %v234 = vlog2.pop %v156
    %v235 = vmul.f32 %v234, 0.6931472
    %v236 = vlog2.pop %v157
    %v237 = vmul.f32 %v236, 0.6931472
    %v238 = vlog2.pop %v158
    %v239 = vmul.f32 %v238, 0.6931472
    %v240 = vadd.f32 %v193, 0.6931472
    %v241 = vadd.f32 %v195, 0.6931472
    %v242 = vadd.f32 %v197, 0.6931472
    %v243 = vadd.f32 %v199, 0.6931472
    %v244 = vadd.f32 %v201, 0.6931472
    %v245 = vadd.f32 %v203, 0.6931472
    %v246 = vadd.f32 %v205, 0.6931472
    %v247 = vadd.f32 %v207, 0.6931472
    %v248 = vadd.f32 %v209, 0.6931472
    %v249 = vadd.f32 %v211, 0.6931472
    %v250 = vadd.f32 %v213, 0.6931472
    %v251 = vadd.f32 %v215, 0.6931472
    %v252 = vadd.f32 %v217, 0.6931472
    %v253 = vadd.f32 %v219, 0.6931472
    %v254 = vadd.f32 %v221, 0.6931472
    %v255 = vadd.f32 %v223, 0.6931472
    %v256 = vadd.f32 %v225, 0.6931472
    %v257 = vadd.f32 %v227, 0.6931472
    %v258 = vadd.f32 %v229, 0.6931472
    %v259 = vadd.f32 %v231, 0.6931472
    %v260 = vadd.f32 %v233, 0.6931472
    %v261 = vadd.f32 %v235, 0.6931472
    %v262 = vadd.f32 %v237, 0.6931472
    %v263 = vadd.f32 %v239, 0.6931472
    %v264 = vsub.f32 %v159, %v87
    %v265 = vsub.f32 %v160, %v88
    %v266 = vsub.f32 %v161, %v89
    %v267 = vsub.f32 %v162, %v90
    %v268 = vsub.f32 %v159, %v91
    %v269 = vsub.f32 %v160, %v92
    %v270 = vsub.f32 %v161, %v93
    %v271 = vsub.f32 %v162, %v94
    %v272 = vsub.f32 %v159, %v95
    %v273 = vsub.f32 %v160, %v96
    %v274 = vsub.f32 %v161, %v97
    %v275 = vsub.f32 %v162, %v98
    %v276 = vsub.f32 %v159, %v99
    %v277 = vsub.f32 %v160, %v100
    %v278 = vsub.f32 %v161, %v101
    %v279 = vsub.f32 %v162, %v102
    %v280 = vsub.f32 %v159, %v103
    %v281 = vsub.f32 %v160, %v104
    %v282 = vsub.f32 %v161, %v105
    %v283 = vsub.f32 %v162, %v106
    %v284 = vsub.f32 %v159, %v107
    %v285 = vsub.f32 %v160, %v108
    %v286 = vsub.f32 %v161, %v109
    %v287 = vsub.f32 %v162, %v110
    %v288 = vand.u32 2147483647, %v264
    %v289 = vand.u32 2147483647, %v265
    %v290 = vand.u32 2147483647, %v266
    %v291 = vand.u32 2147483647, %v267
    %v292 = vand.u32 2147483647, %v268
    %v293 = vand.u32 2147483647, %v269
    %v294 = vand.u32 2147483647, %v270
    %v295 = vand.u32 2147483647, %v271
    %v296 = vand.u32 2147483647, %v272
    %v297 = vand.u32 2147483647, %v273
    %v298 = vand.u32 2147483647, %v274
    %v299 = vand.u32 2147483647, %v275
    %v300 = vand.u32 2147483647, %v276
    %v301 = vand.u32 2147483647, %v277
    %v302 = vand.u32 2147483647, %v278
    %v303 = vand.u32 2147483647, %v279
    %v304 = vand.u32 2147483647, %v280
    %v305 = vand.u32 2147483647, %v281
    %v306 = vand.u32 2147483647, %v282
    %v307 = vand.u32 2147483647, %v283
    %v308 = vand.u32 2147483647, %v284
    %v309 = vand.u32 2147483647, %v285
    %v310 = vand.u32 2147483647, %v286
    %v311 = vand.u32 2147483647, %v287
    %v312 = vmul.f32 %v288, %v168
    %v313 = vmul.f32 %v289, %v169
    %v314 = vmul.f32 %v290, %v170
    %v315 = vmul.f32 %v291, %v171
    %v316 = vmul.f32 %v292, %v172
    %v317 = vmul.f32 %v293, %v173
    %v318 = vmul.f32 %v294, %v174
    %v319 = vmul.f32 %v295, %v175
    %v320 = vmul.f32 %v296, %v176
    %v321 = vmul.f32 %v297, %v177
    %v322 = vmul.f32 %v298, %v178
    %v323 = vmul.f32 %v299, %v179
    %v324 = vmul.f32 %v300, %v180
    %v325 = vmul.f32 %v301, %v181
    %v326 = vmul.f32 %v302, %v182
    %v327 = vmul.f32 %v303, %v183
    %v328 = vmul.f32 %v304, %v184
    %v329 = vmul.f32 %v305, %v185
    %v330 = vmul.f32 %v306, %v186
    %v331 = vmul.f32 %v307, %v187
    %v332 = vmul.f32 %v308, %v188
    %v333 = vmul.f32 %v309, %v189
    %v334 = vmul.f32 %v310, %v190
    %v335 = vmul.f32 %v311, %v191
    %v336 = vadd.f32 %v240, %v312
    %v337 = vadd.f32 %v241, %v313
    %v338 = vadd.f32 %v242, %v314
    %v339 = vadd.f32 %v243, %v315
    %v340 = vadd.f32 %v244, %v316
    %v341 = vadd.f32 %v245, %v317
    %v342 = vadd.f32 %v246, %v318
    %v343 = vadd.f32 %v247, %v319
    %v344 = vadd.f32 %v248, %v320
    %v345 = vadd.f32 %v249, %v321
    %v346 = vadd.f32 %v250, %v322
    %v347 = vadd.f32 %v251, %v323
    %v348 = vadd.f32 %v252, %v324
    %v349 = vadd.f32 %v253, %v325
    %v350 = vadd.f32 %v254, %v326
    %v351 = vadd.f32 %v255, %v327
    %v352 = vadd.f32 %v256, %v328
    %v353 = vadd.f32 %v257, %v329
    %v354 = vadd.f32 %v258, %v330
    %v355 = vadd.f32 %v259, %v331
    %v356 = vadd.f32 %v260, %v332
    %v357 = vadd.f32 %v261, %v333
    %v358 = vadd.f32 %v262, %v334
    %v359 = vadd.f32 %v263, %v335
    %v360 = vmul.f32 %v336, %v163
    %v361 = vmul.f32 %v337, %v164
    %v362 = vmul.f32 %v338, %v165
    %v363 = vmul.f32 %v339, %v166
    %v364 = vmul.f32 %v340, %v163
    %v365 = vmul.f32 %v341, %v164
    %v366 = vmul.f32 %v342, %v165
    %v367 = vmul.f32 %v343, %v166
    %v368 = vmul.f32 %v344, %v163
    %v369 = vmul.f32 %v345, %v164
    %v370 = vmul.f32 %v346, %v165
    %v371 = vmul.f32 %v347, %v166
    %v372 = vmul.f32 %v348, %v163
    %v373 = vmul.f32 %v349, %v164
    %v374 = vmul.f32 %v350, %v165
    %v375 = vmul.f32 %v351, %v166
    %v376 = vmul.f32 %v352, %v163
    %v377 = vmul.f32 %v353, %v164
    %v378 = vmul.f32 %v354, %v165
    %v379 = vmul.f32 %v355, %v166
    %v380 = vmul.f32 %v356, %v163
    %v381 = vmul.f32 %v357, %v164
    %v382 = vmul.f32 %v358, %v165
    %v383 = vmul.f32 %v359, %v166
    %v384 = vadd.f32 %v360, %v361
    %v385 = vadd.f32 %v384, %v362
    %v386 = vadd.f32 %v385, %v363
    %v387 = vrot.slane %v386, 4
    %v388 = vadd.f32 %v386, %v387
    %v389 = vrot.slane %v388, 2
    %v390 = vadd.f32 %v388, %v389
    %v391 = vrot.slane %v390, 1
    %v392 = vadd.f32 %v390, %v391
    %v393 = vadd.f32 %v364, %v365
    %v394 = vadd.f32 %v393, %v366
    %v395 = vadd.f32 %v394, %v367
    %v396 = vrot.slane %v395, 4
    %v397 = vadd.f32 %v395, %v396
    %v398 = vrot.slane %v397, 2
    %v399 = vadd.f32 %v397, %v398
    %v400 = vrot.slane %v399, 1
    %v401 = vadd.f32 %v399, %v400
    %v402 = vadd.f32 %v368, %v369
    %v403 = vadd.f32 %v402, %v370
    %v404 = vadd.f32 %v403, %v371
    %v405 = vrot.slane %v404, 4
    %v406 = vadd.f32 %v404, %v405
    %v407 = vrot.slane %v406, 2
    %v408 = vadd.f32 %v406, %v407
    %v409 = vrot.slane %v408, 1
    %v410 = vadd.f32 %v408, %v409
    %v411 = vadd.f32 %v372, %v373
    %v412 = vadd.f32 %v411, %v374
    %v413 = vadd.f32 %v412, %v375
    %v414 = vrot.slane %v413, 4
    %v415 = vadd.f32 %v413, %v414
    %v416 = vrot.slane %v415, 2
    %v417 = vadd.f32 %v415, %v416
    %v418 = vrot.slane %v417, 1
    %v419 = vadd.f32 %v417, %v418
    %v420 = vadd.f32 %v376, %v377
    %v421 = vadd.f32 %v420, %v378
    %v422 = vadd.f32 %v421, %v379
    %v423 = vrot.slane %v422, 4
    %v424 = vadd.f32 %v422, %v423
    %v425 = vrot.slane %v424, 2
    %v426 = vadd.f32 %v424, %v425
    %v427 = vrot.slane %v426, 1
    %v428 = vadd.f32 %v426, %v427
    %v429 = vadd.f32 %v380, %v381
    %v430 = vadd.f32 %v429, %v382
    %v431 = vadd.f32 %v430, %v383
    %v432 = vrot.slane %v431, 4
    %v433 = vadd.f32 %v431, %v432
    %v434 = vrot.slane %v433, 2
    %v435 = vadd.f32 %v433, %v434
    %v436 = vrot.slane %v435, 1
    %v437 = vadd.f32 %v435, %v436
    %vm438 = vcmask 1045504
    %v439 = vsel %vm438, %v167, -inf
    %v440 = vrot.slane %v439, 4
    %v441 = vmax.f32 %v439, %v440
    %v442 = vrot.slane %v441, 2
    %v443 = vmax.f32 %v441, %v442
    %v444 = vrot.slane %v443, 1
    %v445 = vmax.f32 %v443, %v444
    %v446 = vsub.f32 %v167, %v445
    %v447 = vmul.f32 %v446, 1.442695
    %v448 = vpow.pop %v447
    %v449 = vsel %vm438, %v448, 0.0
    %v450 = vrot.slane %v449, 4
    %v451 = vadd.f32 %v449, %v450
    %v452 = vrot.slane %v451, 2
    %v453 = vadd.f32 %v451, %v452
    %v454 = vrot.slane %v453, 1
    %v455 = vadd.f32 %v453, %v454
    %v456 = vlog2.pop %v455
    %v457 = vmul.f32 %v456, 0.6931472
    %v458 = vsub.f32 %v446, %v457
    %vm465 = vcmask 1041409
    %v466 = vsel %vm465, %v401, %v392
    %vm467 = vcmask 1042434
    %v468 = vsel %vm467, %v410, %v466
    %vm469 = vcmask 1043459
    %v470 = vsel %vm469, %v419, %v468
    %vm471 = vcmask 1044484
    %v472 = vsel %vm471, %v428, %v470
    %vm473 = vcmask 1045509
    %v474 = vsel %vm473, %v437, %v472
    %v476 = vsub.f32 %v458, %v474
    %v477 = vsel %vm438, %v476, -inf
    %v478 = vrot.slane %v477, 4
    %v479 = vmax.f32 %v477, %v478
    %v480 = vrot.slane %v479, 2
    %v481 = vmax.f32 %v479, %v480
    %v482 = vrot.slane %v481, 1
    %v483 = vmax.f32 %v481, %v482
    %v484 = vsub.f32 %v476, %v483
    %v485 = vmul.f32 %v484, 1.442695
    %v486 = vpow.pop %v485
    %v487 = vsel %vm438, %v486, 0.0
    %v488 = vrot.slane %v487, 4
    %v489 = vadd.f32 %v487, %v488
    %v490 = vrot.slane %v489, 2
    %v491 = vadd.f32 %v489, %v490
    %v492 = vrot.slane %v491, 1
    %v493 = vadd.f32 %v491, %v492
    %v494 = vlog2.pop %v493
    %v495 = vmul.f32 %v494, 0.6931472
    %v496 = vadd.f32 %v483, %v495
    %v497 = vsub.f32 0.0, %v496
    %498 = vst [vmem:[#allocation11] sm:$0x1] %v497
    // Predicated region
    $region42: #{tpu_custom_call.1} parent=1 // pred_check
      _
    $region43: #{tpu_custom_call.1} parent=1 // pred_check_branch
      %500 = sbr.rel (0) target = $region45
    $region44: #{tpu_custom_call.1} parent=1 // pred_region
      %s502 = ssub.s32 16, 16
      %503 = vsyncadd [#allocation4], %s502
      %s505 = sshll.u32 [#allocation11], 4
      %s506 = int_to_ptr.vmem [resolvable:$true] %s505
      %508 = dma.vmem_to_hbm [thread:$0]  %s506, 16, %s5, [#allocation4]
    $region45: #{tpu_custom_call.1} parent=1 // pred_fallthru
      _
    // Predicated region
    $region46: #{tpu_custom_call.1} parent=1 // pred_check
      _
    $region47: #{tpu_custom_call.1} parent=1 // pred_check_branch
      %510 = sbr.rel (0) target = $region49
    $region48: #{tpu_custom_call.1} parent=1 // pred_region
      %511 = dma.done [#allocation4], 16
    $region49: #{tpu_custom_call.1} parent=1 // pred_fallthru
      _
    %512 = vsyncpa [#allocation3], 1
    %513 = vsyncpa [#allocation6], 1
    %514 = vsyncpa [#allocation9], 1
    %515 = vsyncpa [#allocation4], 1

</llo_original>
